<compile_context>
chip_gen: v7x
topology: tpu7x:2x2x1
jax: 0.10.0
libtpu: 0.0.40
codegen_flags: <defaults>
</compile_context>

<pallas_src>
import math
import functools

import jax
import jax.numpy as jnp
from jax.experimental import pallas as pl
from jax.experimental.pallas import tpu as pltpu


# --------------------------------------------------------------------------
# Kernel 1: GroupNorm (affine folded into W/b) + QKV 1x1 conv (bf16 MXU matmul)
# --------------------------------------------------------------------------
def _norm_qkv_kernel(x_ref, w_ref, b_ref, q_ref, k_ref, v_ref, *, num_groups, eps):
    x = x_ref[0]                                      # [C, T] f32
    C, T = x.shape
    cpg = C // num_groups
    n = cpg * T

    # One-pass statistics: sum and sum-of-squares (halves the reduction work).
    s1 = jnp.sum(x, axis=1, keepdims=True)            # [C, 1]
    s2 = jnp.sum(x * x, axis=1, keepdims=True)        # [C, 1]
    g1 = jnp.sum(s1.reshape(num_groups, cpg), axis=1, keepdims=True)   # [G, 1]
    g2 = jnp.sum(s2.reshape(num_groups, cpg), axis=1, keepdims=True)   # [G, 1]
    mean_g = g1 * (1.0 / n)
    var_g = jnp.maximum(g2 * (1.0 / n) - mean_g * mean_g, 0.0)
    inv_g = jax.lax.rsqrt(var_g + eps)                # EUP rsqrt, [G, 1]

    mean_c = jnp.broadcast_to(mean_g, (num_groups, cpg)).reshape(C, 1)
    inv_c = jnp.broadcast_to(inv_g, (num_groups, cpg)).reshape(C, 1)

    # gamma/beta and the 1/ch**0.25 attention scale are folded into w_ref/b_ref.
    xn16 = ((x - mean_c) * inv_c).astype(jnp.bfloat16)                 # [C, T]

    qkv = jnp.dot(w_ref[...], xn16,
                  preferred_element_type=jnp.float32) + b_ref[...]     # [3C, T] f32

    # Rows are [q-block | k-block | v-block], heads contiguous inside each block.
    q_ref[0] = qkv[:C]
    k_ref[0] = qkv[C:2 * C]
    v_ref[0] = qkv[2 * C:]


# --------------------------------------------------------------------------
# Kernel 2: flash-style attention, grid = (B*H, num_q_tiles, num_k_tiles)
# --------------------------------------------------------------------------
def _flash_attn_kernel(q_ref, k_ref, v_ref, o_ref, m_sc, l_sc, acc_sc):
    ki = pl.program_id(2)

    @pl.when(ki == 0)
    def _():
        m_sc[...] = jnp.full_like(m_sc, -jnp.inf)
        l_sc[...] = jnp.zeros_like(l_sc)
        acc_sc[...] = jnp.zeros_like(acc_sc)

    q = q_ref[0].astype(jnp.bfloat16)                 # [ch, TQ]
    k = k_ref[0].astype(jnp.bfloat16)                 # [ch, TK]

    # Key-major scores: s[key, query]  (scale already folded into the weights).
    s = jax.lax.dot_general(k, q, (((0,), (0,)), ((), ())),
                            preferred_element_type=jnp.float32)        # [TK, TQ]

    m_prev = m_sc[...]                                # [1, TQ]
    m_cur = jnp.max(s, axis=0, keepdims=True)         # [1, TQ]
    m_new = jnp.maximum(m_prev, m_cur)
    alpha = jnp.exp(m_prev - m_new)                   # [1, TQ]
    p = jnp.exp(s - m_new)                            # [TK, TQ] f32

    l_sc[...] = alpha * l_sc[...] + jnp.sum(p, axis=0, keepdims=True)

    pv = jnp.dot(v_ref[0].astype(jnp.bfloat16), p.astype(jnp.bfloat16),
                 preferred_element_type=jnp.float32)  # [ch, TQ]
    acc_sc[...] = alpha * acc_sc[...] + pv
    m_sc[...] = m_new

    @pl.when(ki == pl.num_programs(2) - 1)
    def _():
        inv_l = pl.reciprocal(l_sc[...], approx=True)  # EUP reciprocal, [1, TQ]
        o_ref[0] = (acc_sc[...] * inv_l).astype(o_ref.dtype)


# --------------------------------------------------------------------------
# Kernel 3: zero-init 1x1 conv projection (bf16 MXU) + residual add
# --------------------------------------------------------------------------
def _proj_residual_kernel(x_ref, a_ref, w_ref, b_ref, o_ref):
    a16 = a_ref[0].astype(jnp.bfloat16)               # [C, TT]
    h = jnp.dot(w_ref[...], a16,
                preferred_element_type=jnp.float32) + b_ref[...]       # [C, TT]
    o_ref[0] = x_ref[0] + h


def _pick_tile(t, pref=256):
    """256-wide tiles (v6e/v7x MXU) when divisible, else 128, else whole axis."""
    if t <= pref:
        return t
    for cand in (pref, 128):
        if t % cand == 0:
            return cand
    return t


def attention_block_forward(x, params, *, num_heads, num_groups=32, eps=1e-5):
    """x: [B, C, H, W] float32 (NCHW, like the PyTorch module)."""
    B, C, H, W = x.shape
    T = H * W
    nh = num_heads
    ch = C // nh
    assert C % nh == 0 and C % num_groups == 0

    x3 = x.reshape(B, C, T).astype(jnp.float32)

    gamma = params["gn_weight"].reshape(C).astype(jnp.float32)
    beta = params["gn_bias"].reshape(C).astype(jnp.float32)
    wqkv = params["qkv_weight"].reshape(3 * C, C).astype(jnp.float32)
    bqkv = params["qkv_bias"].reshape(3 * C).astype(jnp.float32)
    wproj = params["proj_weight"].reshape(C, C).astype(jnp.float32)
    bproj = params["proj_bias"].reshape(C).astype(jnp.float32)

    # ---- host-side weight prep (exact f32 math, then bf16 cast) ----
    # (a) de-interleave legacy rows [head, (q|k|v), ch] -> [(q|k|v), head, ch]
    w_p = wqkv.reshape(nh, 3, ch, C).transpose(1, 0, 2, 3).reshape(3 * C, C)
    b_p = bqkv.reshape(nh, 3, ch).transpose(1, 0, 2).reshape(3 * C)
    # (b) fold the attention scale 1/ch**0.25 into the q and k rows
    scale = 1.0 / math.sqrt(math.sqrt(ch))
    row_scale = jnp.concatenate([jnp.full((2 * C,), scale, jnp.float32),
                                 jnp.ones((C,), jnp.float32)])          # [3C]
    # (c) fold GroupNorm affine:  W @ (xhat*gamma + beta) + b
    #                           = (W*gamma) @ xhat + (W@beta + b)
    w_fold = (w_p * gamma[None, :]) * row_scale[:, None]                # [3C, C]
    b_fold = row_scale * (b_p + w_p @ beta)                             # [3C]

    wqkv_bf16 = w_fold.astype(jnp.bfloat16)
    bqkv_f32 = b_fold.reshape(3 * C, 1)
    wproj_bf16 = wproj.astype(jnp.bfloat16)
    bproj_f32 = bproj.reshape(C, 1)

    cparams = functools.partial(pltpu.CompilerParams,
                                vmem_limit_bytes=48 * 1024 * 1024)

    # ---------------- kernel 1: GroupNorm + QKV ----------------
    kern1 = functools.partial(_norm_qkv_kernel, num_groups=num_groups, eps=eps)
    q3, k3, v3 = pl.pallas_call(
        kern1,
        out_shape=(jax.ShapeDtypeStruct((B, C, T), jnp.float32),
                   jax.ShapeDtypeStruct((B, C, T), jnp.float32),
                   jax.ShapeDtypeStruct((B, C, T), jnp.float32)),
        grid_spec=pltpu.PrefetchScalarGridSpec(
            num_scalar_prefetch=0,
            grid=(B,),
            in_specs=[
                pl.BlockSpec((1, C, T), lambda i: (i, 0, 0)),       # x
                pl.BlockSpec((3 * C, C), lambda i: (0, 0)),         # folded W (bf16)
                pl.BlockSpec((3 * C, 1), lambda i: (0, 0)),         # folded b (f32)
            ],
            out_specs=[
                pl.BlockSpec((1, C, T), lambda i: (i, 0, 0)),
                pl.BlockSpec((1, C, T), lambda i: (i, 0, 0)),
                pl.BlockSpec((1, C, T), lambda i: (i, 0, 0)),
            ],
        ),
        compiler_params=cparams(dimension_semantics=("parallel",)),
    )(x3, wqkv_bf16, bqkv_f32)

    # ---------------- kernel 2: flash attention ----------------
    BH = B * nh
    qh = q3.reshape(BH, ch, T)      # free reshape: heads are contiguous
    kh = k3.reshape(BH, ch, T)
    vh = v3.reshape(BH, ch, T)

    TQ = _pick_tile(T)
    TK = _pick_tile(T)
    nq, nk = T // TQ, T // TK

    a_h = pl.pallas_call(
        _flash_attn_kernel,
        out_shape=jax.ShapeDtypeStruct((BH, ch, T), jnp.float32),
        grid_spec=pltpu.PrefetchScalarGridSpec(
            num_scalar_prefetch=0,
            grid=(BH, nq, nk),
            in_specs=[
                pl.BlockSpec((1, ch, TQ), lambda b, qi, ki: (b, 0, qi)),  # q
                pl.BlockSpec((1, ch, TK), lambda b, qi, ki: (b, 0, ki)),  # k
                pl.BlockSpec((1, ch, TK), lambda b, qi, ki: (b, 0, ki)),  # v
            ],
            out_specs=pl.BlockSpec((1, ch, TQ), lambda b, qi, ki: (b, 0, qi)),
            scratch_shapes=[
                pltpu.VMEM((1, TQ), jnp.float32),    # running max m
                pltpu.VMEM((1, TQ), jnp.float32),    # running denom l
                pltpu.VMEM((ch, TQ), jnp.float32),   # output accumulator
            ],
        ),
        compiler_params=cparams(
            dimension_semantics=("parallel", "parallel", "arbitrary")),
    )(qh, kh, vh)

    # ---------------- kernel 3: projection + residual ----------------
    a3 = a_h.reshape(B, C, T)
    TT = _pick_tile(T)
    nt = T // TT

    out3 = pl.pallas_call(
        _proj_residual_kernel,
        out_shape=jax.ShapeDtypeStruct((B, C, T), jnp.float32),
        grid_spec=pltpu.PrefetchScalarGridSpec(
            num_scalar_prefetch=0,
            grid=(B, nt),
            in_specs=[
                pl.BlockSpec((1, C, TT), lambda b, t: (b, 0, t)),   # x (residual)
                pl.BlockSpec((1, C, TT), lambda b, t: (b, 0, t)),   # attention out
                pl.BlockSpec((C, C), lambda b, t: (0, 0)),          # W_proj (bf16)
                pl.BlockSpec((C, 1), lambda b, t: (0, 0)),          # b_proj (f32)
            ],
            out_specs=pl.BlockSpec((1, C, TT), lambda b, t: (b, 0, t)),
        ),
        compiler_params=cparams(dimension_semantics=("parallel", "parallel")),
    )(x3, a3, wproj_bf16, bproj_f32)

    return out3.reshape(B, C, H, W)


# --------------------------------------------------------------------------
# Pure-JAX f32 replica of AttentionBlock.forward (PyTorch semantics)
# --------------------------------------------------------------------------
def reference_forward(x, params, *, num_heads, num_groups=32, eps=1e-5):
    B, C, H, W = x.shape
    T = H * W
    xr = x.reshape(B, C, T)
    xg = xr.reshape(B, num_groups, C // num_groups, T)
    mean = xg.mean(axis=(2, 3), keepdims=True)
    var = ((xg - mean) ** 2).mean(axis=(2, 3), keepdims=True)
    xn = ((xg - mean) / jnp.sqrt(var + eps)).reshape(B, C, T)
    xn = xn * params["gn_weight"][None, :, None] + params["gn_bias"][None, :, None]

    wqkv = params["qkv_weight"].reshape(3 * C, C)
    qkv = jnp.einsum("oc,bct->bot", wqkv, xn) + params["qkv_bias"][None, :, None]

    ch = C // num_heads
    qkv = qkv.reshape(B * num_heads, 3 * ch, T)
    q, k, v = qkv[:, :ch], qkv[:, ch:2 * ch], qkv[:, 2 * ch:]
    scale = 1.0 / math.sqrt(math.sqrt(ch))
    w = jnp.einsum("bct,bcs->bts", q * scale, k * scale)
    w = jax.nn.softmax(w, axis=-1)
    a = jnp.einsum("bts,bcs->bct", w, v).reshape(B, C, T)

    wproj = params["proj_weight"].reshape(C, C)
    hp = jnp.einsum("oc,bct->bot", wproj, a) + params["proj_bias"][None, :, None]
    return (xr + hp).reshape(B, C, H, W)


if __name__ == "__main__":
    # AttentionBlock(channels=32, num_heads=4, num_head_channels=-1);
    # normalization() => GroupNorm(32 groups), so channels must be >= 32.
    B, C, Hs, Ws = 2, 32, 8, 8
    num_heads = 4

    key = jax.random.PRNGKey(0)
    k1, k2, k3, k4, k5, k6, k7 = jax.random.split(key, 7)
    x = jax.random.normal(k1, (B, C, Hs, Ws), dtype=jnp.float32)

    # Parameter shapes match the module's __init__ (GroupNorm affine made
    # non-trivial so the host-side affine fold is actually exercised; proj_out
    # is zero-initialized exactly like zero_module(conv_nd(...))).
    params = {
        "gn_weight": 1.0 + 0.1 * jax.random.normal(k6, (C,), jnp.float32),
        "gn_bias": 0.1 * jax.random.normal(k7, (C,), jnp.float32),
        "qkv_weight": 0.1 * jax.random.normal(k2, (3 * C, C, 1), jnp.float32),
        "qkv_bias": 0.05 * jax.random.normal(k3, (3 * C,), jnp.float32),
        "proj_weight": jnp.zeros((C, C, 1), jnp.float32),
        "proj_bias": jnp.zeros((C,), jnp.float32),
    }

    out = jax.block_until_ready(
        attention_block_forward(x, params, num_heads=num_heads))
    ref = reference_forward(x, params, num_heads=num_heads)
    assert out.shape == (B, C, Hs, Ws)
    # zero-init proj => out == x exactly (both paths)
    assert jnp.allclose(out, ref, atol=1e-4, rtol=1e-4)

    # Non-zero projection so the attention math is exercised end-to-end.
    # Matmuls run in bf16 with f32 accumulation, so compare with a bf16-level
    # tolerance against the pure-f32 reference.
    params_nz = dict(params)
    params_nz["proj_weight"] = 0.1 * jax.random.normal(k4, (C, C, 1), jnp.float32)
    params_nz["proj_bias"] = 0.05 * jax.random.normal(k5, (C,), jnp.float32)
    out_nz = jax.block_until_ready(
        attention_block_forward(x, params_nz, num_heads=num_heads))
    ref_nz = reference_forward(x, params_nz, num_heads=num_heads)
    assert jnp.allclose(out_nz, ref_nz, atol=5e-2, rtol=5e-2)

    print("KERNEL_OK")
</pallas_src>

<mosaic_0001>
module attributes {stable_mosaic.version = 11 : i64} {
  func.func @_norm_qkv_kernel(%arg0: i32, %arg1: memref<1x32x64xf32, #tpu.memory_space<vmem>>, %arg2: memref<96x32xbf16, #tpu.memory_space<vmem>>, %arg3: memref<96x1xf32, #tpu.memory_space<vmem>>, %arg4: memref<1x32x64xf32, #tpu.memory_space<vmem>>, %arg5: memref<1x32x64xf32, #tpu.memory_space<vmem>>, %arg6: memref<1x32x64xf32, #tpu.memory_space<vmem>>) attributes {dimension_semantics = [#tpu.dimension_semantics<parallel>], iteration_bounds = array<i64: 2>, scalar_prefetch = 0 : i64, scratch_operands = 0 : i64, tpu.core_type = #tpu.core_type<tc>, window_params = [{transform_indices = @transform_0, window_bounds = array<i64: 1, 32, 64>}, {pipeline_mode = #tpu.pipeline_mode<synchronous>, transform_indices = @transform_1, window_bounds = array<i64: 96, 32>}, {pipeline_mode = #tpu.pipeline_mode<synchronous>, transform_indices = @transform_2, window_bounds = array<i64: 96, 1>}, {transform_indices = @transform_3, window_bounds = array<i64: 1, 32, 64>}, {transform_indices = @transform_4, window_bounds = array<i64: 1, 32, 64>}, {transform_indices = @transform_5, window_bounds = array<i64: 1, 32, 64>}]} {
    %c0 = arith.constant 0 : index
    %c0_0 = arith.constant 0 : index
    %c0_1 = arith.constant 0 : index
    %0 = vector.load %arg1[%c0, %c0_0, %c0_1] : memref<1x32x64xf32, #tpu.memory_space<vmem>>, vector<1x32x64xf32>
    %1 = vector.shape_cast %0 : vector<1x32x64xf32> to vector<32x64xf32>
    %cst = arith.constant dense<0.000000e+00> : vector<32xf32>
    %2 = vector.multi_reduction <add>, %1, %cst [1] : vector<32x64xf32> to vector<32xf32>
    %3 = vector.shape_cast %2 : vector<32xf32> to vector<32x1xf32>
    %4 = arith.mulf %1, %1 : vector<32x64xf32>
    %cst_2 = arith.constant dense<0.000000e+00> : vector<32xf32>
    %5 = vector.multi_reduction <add>, %4, %cst_2 [1] : vector<32x64xf32> to vector<32xf32>
    %6 = vector.shape_cast %5 : vector<32xf32> to vector<32x1xf32>
    %cst_3 = arith.constant dense<0.000000e+00> : vector<32xf32>
    %7 = vector.multi_reduction <add>, %3, %cst_3 [1] : vector<32x1xf32> to vector<32xf32>
    %8 = vector.shape_cast %7 : vector<32xf32> to vector<32x1xf32>
    %cst_4 = arith.constant dense<0.000000e+00> : vector<32xf32>
    %9 = vector.multi_reduction <add>, %6, %cst_4 [1] : vector<32x1xf32> to vector<32xf32>
    %10 = vector.shape_cast %9 : vector<32xf32> to vector<32x1xf32>
    %cst_5 = arith.constant 1.562500e-02 : f32
    %11 = vector.broadcast %cst_5 : f32 to vector<32x1xf32>
    %12 = arith.mulf %8, %11 : vector<32x1xf32>
    %cst_6 = arith.constant 1.562500e-02 : f32
    %13 = vector.broadcast %cst_6 : f32 to vector<32x1xf32>
    %14 = arith.mulf %10, %13 : vector<32x1xf32>
    %15 = arith.mulf %12, %12 : vector<32x1xf32>
    %16 = arith.subf %14, %15 : vector<32x1xf32>
    %cst_7 = arith.constant 0.000000e+00 : f32
    %17 = vector.broadcast %cst_7 : f32 to vector<32x1xf32>
    %18 = arith.maximumf %16, %17 : vector<32x1xf32>
    %cst_8 = arith.constant 9.99999974E-6 : f32
    %19 = vector.broadcast %cst_8 : f32 to vector<32x1xf32>
    %20 = arith.addf %18, %19 : vector<32x1xf32>
    %21 = math.rsqrt %20 : vector<32x1xf32>
    %22 = vector.broadcast %12 : vector<32x1xf32> to vector<32x64xf32>
    %23 = arith.subf %1, %22 : vector<32x64xf32>
    %24 = vector.broadcast %21 : vector<32x1xf32> to vector<32x64xf32>
    %25 = arith.mulf %23, %24 : vector<32x64xf32>
    %26 = arith.truncf %25 : vector<32x64xf32> to vector<32x64xbf16>
    %c0_9 = arith.constant 0 : index
    %c0_10 = arith.constant 0 : index
    %27 = vector.load %arg2[%c0_9, %c0_10] : memref<96x32xbf16, #tpu.memory_space<vmem>>, vector<96x32xbf16>
    %cst_11 = arith.constant dense<0.000000e+00> : vector<96x64xf32>
    %28 = tpu.matmul %27, %26, %cst_11 {dimension_numbers = #tpu.dot_dimension_numbers<[1], [0], [0], [1], [0, 0, 1, 1], [], []>} : vector<96x32xbf16>, vector<32x64xbf16>, vector<96x64xf32> -> vector<96x64xf32>
    %c0_12 = arith.constant 0 : index
    %c0_13 = arith.constant 0 : index
    %29 = vector.load %arg3[%c0_12, %c0_13] : memref<96x1xf32, #tpu.memory_space<vmem>>, vector<96x1xf32>
    %30 = vector.broadcast %29 : vector<96x1xf32> to vector<96x64xf32>
    %31 = arith.addf %28, %30 : vector<96x64xf32>
    %32 = vector.extract_strided_slice %31 {offsets = [0, 0], sizes = [32, 64], strides = [1, 1]} : vector<96x64xf32> to vector<32x64xf32>
    %c0_14 = arith.constant 0 : index
    %c0_15 = arith.constant 0 : index
    %c0_16 = arith.constant 0 : index
    %33 = vector.load %arg4[%c0_14, %c0_15, %c0_16] : memref<1x32x64xf32, #tpu.memory_space<vmem>>, vector<1x32x64xf32>
    %34 = vector.shape_cast %33 : vector<1x32x64xf32> to vector<32x64xf32>
    %35 = vector.shape_cast %32 : vector<32x64xf32> to vector<1x32x64xf32>
    tpu.vector_store %arg4[%c0_14, %c0_15, %c0_16], %35 {strides = array<i32>} : memref<1x32x64xf32, #tpu.memory_space<vmem>>, vector<1x32x64xf32>,
    %36 = vector.extract_strided_slice %31 {offsets = [32, 0], sizes = [32, 64], strides = [1, 1]} : vector<96x64xf32> to vector<32x64xf32>
    %c0_17 = arith.constant 0 : index
    %c0_18 = arith.constant 0 : index
    %c0_19 = arith.constant 0 : index
    %37 = vector.load %arg5[%c0_17, %c0_18, %c0_19] : memref<1x32x64xf32, #tpu.memory_space<vmem>>, vector<1x32x64xf32>
    %38 = vector.shape_cast %37 : vector<1x32x64xf32> to vector<32x64xf32>
    %39 = vector.shape_cast %36 : vector<32x64xf32> to vector<1x32x64xf32>
    tpu.vector_store %arg5[%c0_17, %c0_18, %c0_19], %39 {strides = array<i32>} : memref<1x32x64xf32, #tpu.memory_space<vmem>>, vector<1x32x64xf32>,
    %40 = vector.extract_strided_slice %31 {offsets = [64, 0], sizes = [32, 64], strides = [1, 1]} : vector<96x64xf32> to vector<32x64xf32>
    %c0_20 = arith.constant 0 : index
    %c0_21 = arith.constant 0 : index
    %c0_22 = arith.constant 0 : index
    %41 = vector.load %arg6[%c0_20, %c0_21, %c0_22] : memref<1x32x64xf32, #tpu.memory_space<vmem>>, vector<1x32x64xf32>
    %42 = vector.shape_cast %41 : vector<1x32x64xf32> to vector<32x64xf32>
    %43 = vector.shape_cast %40 : vector<32x64xf32> to vector<1x32x64xf32>
    tpu.vector_store %arg6[%c0_20, %c0_21, %c0_22], %43 {strides = array<i32>} : memref<1x32x64xf32, #tpu.memory_space<vmem>>, vector<1x32x64xf32>,
    return
  }
  func.func @transform_0(%arg0: i32) -> (i32, i32, i32) {
    %c0_i32 = arith.constant 0 : i32
    %c0_i32_0 = arith.constant 0 : i32
    %c0_i32_1 = arith.constant 0 : i32
    return %arg0, %c0_i32, %c0_i32_0 : i32, i32, i32
  }
  func.func @transform_1(%arg0: i32) -> (i32, i32) {
    %c0_i32 = arith.constant 0 : i32
    %c0_i32_0 = arith.constant 0 : i32
    %c0_i32_1 = arith.constant 0 : i32
    return %c0_i32, %c0_i32_0 : i32, i32
  }
  func.func @transform_2(%arg0: i32) -> (i32, i32) {
    %c0_i32 = arith.constant 0 : i32
    %c0_i32_0 = arith.constant 0 : i32
    %c0_i32_1 = arith.constant 0 : i32
    return %c0_i32, %c0_i32_0 : i32, i32
  }
  func.func @transform_3(%arg0: i32) -> (i32, i32, i32) {
    %c0_i32 = arith.constant 0 : i32
    %c0_i32_0 = arith.constant 0 : i32
    %c0_i32_1 = arith.constant 0 : i32
    return %arg0, %c0_i32, %c0_i32_0 : i32, i32, i32
  }
  func.func @transform_4(%arg0: i32) -> (i32, i32, i32) {
    %c0_i32 = arith.constant 0 : i32
    %c0_i32_0 = arith.constant 0 : i32
    %c0_i32_1 = arith.constant 0 : i32
    return %arg0, %c0_i32, %c0_i32_0 : i32, i32, i32
  }
  func.func @transform_5(%arg0: i32) -> (i32, i32, i32) {
    %c0_i32 = arith.constant 0 : i32
    %c0_i32_0 = arith.constant 0 : i32
    %c0_i32_1 = arith.constant 0 : i32
    return %arg0, %c0_i32, %c0_i32_0 : i32, i32, i32
  }
}

</mosaic_0001>

<llo_original>
// kernel: tpu_custom_call.1
$region0: #{tpu_custom_call.1}
  #allocation0 [shape = 'u32[]', space=smem, size = 0x4, offset = 0x4, fixed_abs, tag = 'smem constant byte address 0x4 - core index']
  #allocation1 [shape = 'u32[144,128]{1,0:T(1,128)}', space=vmem, size = 0x12000, scoped, tag = 'internal scratch']
  %s0 = inlined_call_operand.vmem [shape: f32[2,32,64], index: 0, kind: input, shape index: {}]
  %s1 = inlined_call_operand.vmem [shape: bf16[96,32], index: 1, kind: input, shape index: {}]
  %s2 = inlined_call_operand.vmem [shape: f32[96,1], index: 2, kind: input, shape index: {}]
  %s3 = inlined_call_operand.hbm [shape: f32[2,32,64], index: 3, kind: output, shape index: {0}]
  %s4 = inlined_call_operand.hbm [shape: f32[2,32,64], index: 4, kind: output, shape index: {1}]
  %s5 = inlined_call_operand.hbm [shape: f32[2,32,64], index: 5, kind: output, shape index: {2}]
  %6 = xla_tuple %s3, %s4, %s5
  %s7 = sld [smem:[#allocation0]]
  $region61: #{tpu_custom_call.1} parent=0
    _
  %s9 = ssub.s32 1, %s7
  %s10 = scalar_select 0, %s9, %s7
  $region1: #{tpu_custom_call.1} parent=0
    #allocation2 [shape = 'u8[32768]{0}', space=vmem, size = 0x8000, scoped, tag = 'output window, operand 0']
    #allocation3 [shape = 's32[2]{0}', space=sflag, size = 0x8, scoped, tag = 'scoped memory for tpu_custom_call.1']
    #allocation4 [shape = 'u8[32768]{0}', space=vmem, size = 0x8000, scoped, tag = 'output window, operand 1']
    #allocation5 [shape = 's32[2]{0}', space=sflag, size = 0x8, scoped, tag = 'scoped memory for tpu_custom_call.1']
    #allocation6 [shape = 'u8[32768]{0}', space=vmem, size = 0x8000, scoped, tag = 'output window, operand 2']
    %11 = vsyncpa [#allocation3], 0
    %s12 = scalar_lea.sflag [#allocation3], 1
    %13 = vsyncpa %s12, 0
    %14 = vsyncpa [#allocation5], 0
    %s15 = scalar_lea.sflag [#allocation5], 1
    %16 = vsyncpa %s15, 0
    loop: start=0, step=1, limit=4
    $region2: #{tpu_custom_call.1} parent=1 // loop_pre_header
      _
    $region3: #{tpu_custom_call.1} parent=1 // loop_header
      %s18 = sphi 0, %s22
      %p19 = scmp.ge.s32.totalorder %s18, 4
      %s28 = sphi 0, %s30
      %s31 = sphi 0, %s28
      %s32 = sphi 0, %s31
      %s48 = sphi 0, %s32
      %s52 = sphi 0, %s52
      %s54 = sphi 0, %s52
      %s55 = sphi 0, %s54
      %s69 = sphi 0, %s55
      %s73 = sphi 0, %s73
      %s75 = sphi 0, %s73
      %s76 = sphi 0, %s75
      %s90 = sphi 0, %s76
      %s96 = sphi 0, %s98
      %s99 = sphi 0, %s96
      %s100 = sphi 0, %s99
      %s116 = sphi 0, %s100
      %s122 = sphi 0, %s124
      %s125 = sphi 0, %s122
      %s126 = sphi 0, %s125
      %s142 = sphi 0, %s126
      %s148 = sphi 0, %s150
      %s151 = sphi 0, %s148
      %s152 = sphi 0, %s151
      %s168 = sphi 0, %s152
    $region4: #{tpu_custom_call.1} parent=1 // loop_header_branch
      %21 = sbr.rel (%p19) target = $region8
    $region5: #{tpu_custom_call.1} parent=1 // loop_body
      %s23 = ssub.s32 %s18, 1
      %s24 = ssub.s32 %s18, 2
      %s25 = sadd.s32 %s18, 1
      %s26 = ssub.s32 %s18, %s25
      %p27 = scmp.eq.s32.totalorder %s26, 0
      %s29 = sadd.s32 %s28, 1
      %s30 = scalar_select %p27, %s28, %s29
      %p33 = pneg %p27
      %p34 = scmp.eq.s32.totalorder %s18, 1
      %p35 = por %p33, %p34
      %p36 = scmp.ne.s32.totalorder %s28, %s31
      %p37 = scmp.eq.s32.totalorder %s18, 0
      %p38 = por %p36, %p37
      %p39 = scmp.ne.s32.totalorder %s28, %s31
      %p40 = scmp.eq.s32.totalorder %s23, 1
      %p41 = por %p39, %p40
      %p42 = scmp.ne.s32.totalorder %s31, %s32
      %p43 = scmp.eq.s32.totalorder %s23, 0
      %p44 = por %p42, %p43
      %p45 = scmp.ne.s32.totalorder %s31, %s32
      %p46 = scmp.eq.s32.totalorder %s24, 1
      %p47 = por %p45, %p46
      %p49 = scmp.ne.s32.totalorder %s32, %s48
      %p50 = scmp.eq.s32.totalorder %s24, 0
      %p51 = por %p49, %p50
      %s53 = sadd.s32 %s52, 1
      %p56 = scmp.eq.s32.totalorder %s18, 1
      %p57 = scmp.ne.s32.totalorder %s52, %s54
      %p58 = scmp.eq.s32.totalorder %s18, 0
      %p59 = por %p57, %p58
      %p60 = scmp.ne.s32.totalorder %s52, %s54
      %p61 = scmp.eq.s32.totalorder %s23, 1
      %p62 = por %p60, %p61
      %p63 = scmp.ne.s32.totalorder %s54, %s55
      %p64 = scmp.eq.s32.totalorder %s23, 0
      %p65 = por %p63, %p64
      %p66 = scmp.ne.s32.totalorder %s54, %s55
      %p67 = scmp.eq.s32.totalorder %s24, 1
      %p68 = por %p66, %p67
      %p70 = scmp.ne.s32.totalorder %s55, %s69
      %p71 = scmp.eq.s32.totalorder %s24, 0
      %p72 = por %p70, %p71
      %s74 = sadd.s32 %s73, 1
      %p77 = scmp.eq.s32.totalorder %s18, 1
      %p78 = scmp.ne.s32.totalorder %s73, %s75
      %p79 = scmp.eq.s32.totalorder %s18, 0
      %p80 = por %p78, %p79
      %p81 = scmp.ne.s32.totalorder %s73, %s75
      %p82 = scmp.eq.s32.totalorder %s23, 1
      %p83 = por %p81, %p82
      %p84 = scmp.ne.s32.totalorder %s75, %s76
      %p85 = scmp.eq.s32.totalorder %s23, 0
      %p86 = por %p84, %p85
      %p87 = scmp.ne.s32.totalorder %s75, %s76
      %p88 = scmp.eq.s32.totalorder %s24, 1
      %p89 = por %p87, %p88
      %p91 = scmp.ne.s32.totalorder %s76, %s90
      %p92 = scmp.eq.s32.totalorder %s24, 0
      %p93 = por %p91, %p92
      %s94 = ssub.s32 %s18, %s25
      %p95 = scmp.eq.s32.totalorder %s94, 0
      %s97 = sadd.s32 %s96, 1
      %s98 = scalar_select %p95, %s96, %s97
      %p101 = pneg %p95
      %p102 = scmp.eq.s32.totalorder %s18, 1
      %p103 = por %p101, %p102
      %p104 = scmp.ne.s32.totalorder %s96, %s99
      %p105 = scmp.eq.s32.totalorder %s18, 0
      %p106 = por %p104, %p105
      %p107 = scmp.ne.s32.totalorder %s96, %s99
      %p108 = scmp.eq.s32.totalorder %s23, 1
      %p109 = por %p107, %p108
      %p110 = scmp.ne.s32.totalorder %s99, %s100
      %p111 = scmp.eq.s32.totalorder %s23, 0
      %p112 = por %p110, %p111
      %p113 = scmp.ne.s32.totalorder %s99, %s100
      %p114 = scmp.eq.s32.totalorder %s24, 1
      %p115 = por %p113, %p114
      %p117 = scmp.ne.s32.totalorder %s100, %s116
      %p118 = scmp.eq.s32.totalorder %s24, 0
      %p119 = por %p117, %p118
      %s120 = ssub.s32 %s18, %s25
      %p121 = scmp.eq.s32.totalorder %s120, 0
      %s123 = sadd.s32 %s122, 1
      %s124 = scalar_select %p121, %s122, %s123
      %p127 = pneg %p121
      %p128 = scmp.eq.s32.totalorder %s18, 1
      %p129 = por %p127, %p128
      %p130 = scmp.ne.s32.totalorder %s122, %s125
      %p131 = scmp.eq.s32.totalorder %s18, 0
      %p132 = por %p130, %p131
      %p133 = scmp.ne.s32.totalorder %s122, %s125
      %p134 = scmp.eq.s32.totalorder %s23, 1
      %p135 = por %p133, %p134
      %p136 = scmp.ne.s32.totalorder %s125, %s126
      %p137 = scmp.eq.s32.totalorder %s23, 0
      %p138 = por %p136, %p137
      %p139 = scmp.ne.s32.totalorder %s125, %s126
      %p140 = scmp.eq.s32.totalorder %s24, 1
      %p141 = por %p139, %p140
      %p143 = scmp.ne.s32.totalorder %s126, %s142
      %p144 = scmp.eq.s32.totalorder %s24, 0
      %p145 = por %p143, %p144
      %s146 = ssub.s32 %s18, %s25
      %p147 = scmp.eq.s32.totalorder %s146, 0
      %s149 = sadd.s32 %s148, 1
      %s150 = scalar_select %p147, %s148, %s149
      %p153 = pneg %p147
      %p154 = scmp.eq.s32.totalorder %s18, 1
      %p155 = por %p153, %p154
      %p156 = scmp.ne.s32.totalorder %s148, %s151
      %p157 = scmp.eq.s32.totalorder %s18, 0
      %p158 = por %p156, %p157
      %p159 = scmp.ne.s32.totalorder %s148, %s151
      %p160 = scmp.eq.s32.totalorder %s23, 1
      %p161 = por %p159, %p160
      %p162 = scmp.ne.s32.totalorder %s151, %s152
      %p163 = scmp.eq.s32.totalorder %s23, 0
      %p164 = por %p162, %p163
      %p165 = scmp.ne.s32.totalorder %s151, %s152
      %p166 = scmp.eq.s32.totalorder %s24, 1
      %p167 = por %p165, %p166
      %p169 = scmp.ne.s32.totalorder %s152, %s168
      %p170 = scmp.eq.s32.totalorder %s24, 0
      %p171 = por %p169, %p170
      %p172 = scmp.le.s32.totalorder 1, %s18
      %p173 = scmp.lt.s32.totalorder %s18, 3
      %p174 = pnand %p172, %p173
      %p175 = pneg %p174
      // Predicated region
      $region9: #{tpu_custom_call.1} parent=5 // pred_check
        _
      $region10: #{tpu_custom_call.1} parent=5 // pred_check_branch
        %177 = sbr.rel (%p174) target = $region12
      $region11: #{tpu_custom_call.1} parent=5 // pred_region
        %s178 = ssub.s32 %s18, 1
        // Predicated region
        $region13: #{tpu_custom_call.1} parent=11 // pred_check
          %p179 = pneg %p65
        $region14: #{tpu_custom_call.1} parent=11 // pred_check_branch
          %181 = sbr.rel (%p179) target = $region16
        $region15: #{tpu_custom_call.1} parent=11 // pred_region
          _
        $region16: #{tpu_custom_call.1} parent=11 // pred_fallthru
          _
        // Predicated region
        $region17: #{tpu_custom_call.1} parent=11 // pred_check
          %p182 = pneg %p86
        $region18: #{tpu_custom_call.1} parent=11 // pred_check_branch
          %184 = sbr.rel (%p182) target = $region20
        $region19: #{tpu_custom_call.1} parent=11 // pred_region
          _
        $region20: #{tpu_custom_call.1} parent=11 // pred_fallthru
          _
      $region12: #{tpu_custom_call.1} parent=5 // pred_fallthru
        _
      %p185 = scmp.lt.s32.totalorder %s18, 2
      // Predicated region
      $region21: #{tpu_custom_call.1} parent=5 // pred_check
        %p186 = pneg %p185
      $region22: #{tpu_custom_call.1} parent=5 // pred_check_branch
        %188 = sbr.rel (%p186) target = $region24
      $region23: #{tpu_custom_call.1} parent=5 // pred_region
        // Predicated region
        $region25: #{tpu_custom_call.1} parent=23 // pred_check
          %p189 = pneg %p38
        $region26: #{tpu_custom_call.1} parent=23 // pred_check_branch
          %191 = sbr.rel (%p189) target = $region28
        $region27: #{tpu_custom_call.1} parent=23 // pred_region
          %p192 = scmp.lt.s32.totalorder %s18, 1
          %s193 = scalar_select %p192, %s18, 1
          %s194 = smul.addr %s193, 4
          %s195 = smul.addr %s194, 8
          %s196 = scalar_lea.vmem %s0, %s195
        $region28: #{tpu_custom_call.1} parent=23 // pred_fallthru
          _
      $region24: #{tpu_custom_call.1} parent=5 // pred_fallthru
        _
      %p197 = scmp.le.s32.totalorder 1, %s18
      %p198 = scmp.lt.s32.totalorder %s18, 3
      %p199 = pnand %p197, %p198
      %p200 = pneg %p199
      // Predicated region
      $region29: #{tpu_custom_call.1} parent=5 // pred_check
        _
      $region30: #{tpu_custom_call.1} parent=5 // pred_check_branch
        %202 = sbr.rel (%p199) target = $region32
      $region31: #{tpu_custom_call.1} parent=5 // pred_region
        %s203 = ssub.s32 %s18, 1
        %p204 = scmp.lt.s32.totalorder %s23, 1
        %s205 = scalar_select %p204, %s23, 1
        %s206 = smul.addr %s205, 4
        %s207 = smul.addr %s206, 8
        %s208 = scalar_lea.vmem %s0, %s207
        %p209 = pneg %p44
        %p210 = pneg %p41
        %p211 = pneg %p65
        %p212 = pneg %p62
        %p213 = pneg %p86
        %p214 = pneg %p83
        %p215 = pneg %p112
        %p216 = pneg %p109
        %s217 = sand.u32 %s99, 1
        %s218 = scalar_lea.sflag [#allocation3], %s217
        %s219 = sand.u32 %s99, 1
        %s220 = smul.addr %s219, 32
        %s221 = scalar_lea.vmem [#allocation2], %s220
        %p222 = pneg %p138
        %p223 = pneg %p135
        %s224 = sand.u32 %s23, 1
        %s225 = scalar_lea.sflag [#allocation5], %s224
        %s226 = sand.u32 %s125, 1
        %s227 = smul.addr %s226, 32
        %s228 = scalar_lea.vmem [#allocation4], %s227
        %p229 = pneg %p164
        %p230 = pneg %p161
        %s231 = sand.u32 %s23, 1
        %s232 = scalar_lea.sflag [#allocation5], %s231
        %s233 = sand.u32 %s151, 1
        %s234 = smul.addr %s233, 32
        %s235 = scalar_lea.vmem [#allocation6], %s234
        %p236 = scmp.lt.s32.totalorder %s23, 1
        %s237 = scalar_select %p236, %s23, 1
        %s238 = smul.addr %s237, 4
        %s239 = smul.addr %s238, 8
        %s240 = scalar_lea.vmem %s0, %s239
        %v242 = vld [vmem:[%s240] sm:$0xff]
        %v243 = vld [vmem:[%s240 + $0x8] sm:$0xff]
        %v244 = vld [vmem:[%s240 + $0x10] sm:$0xff]
        %v245 = vld [vmem:[%s240 + $0x18] sm:$0xff]
        %vm246 = vcmask 523264
        %v247 = vsel %vm246, %v242, 0.0
        %248 = vadd.xlane.f32.xlu0 %v247
        %v249 = vpop.xlane.xlu0 %248
        %v250 = vsel %vm246, %v243, 0.0
        %251 = vadd.xlane.f32.xlu0 %v250
        %v252 = vpop.xlane.xlu0 %251
        %v253 = vsel %vm246, %v244, 0.0
        %254 = vadd.xlane.f32.xlu0 %v253
        %v255 = vpop.xlane.xlu0 %254
        %v256 = vsel %vm246, %v245, 0.0
        %257 = vadd.xlane.f32.xlu0 %v256
        %v258 = vpop.xlane.xlu0 %257
        %v259 = vmul.f32 %v242, %v242
        %v260 = vmul.f32 %v243, %v243
        %v261 = vmul.f32 %v244, %v244
        %v262 = vmul.f32 %v245, %v245
        %v263 = vsel %vm246, %v259, 0.0
        %264 = vadd.xlane.f32.xlu0 %v263
        %v265 = vpop.xlane.xlu0 %264
        %v266 = vsel %vm246, %v260, 0.0
        %267 = vadd.xlane.f32.xlu0 %v266
        %v268 = vpop.xlane.xlu0 %267
        %v269 = vsel %vm246, %v261, 0.0
        %270 = vadd.xlane.f32.xlu0 %v269
        %v271 = vpop.xlane.xlu0 %270
        %v272 = vsel %vm246, %v262, 0.0
        %273 = vadd.xlane.f32.xlu0 %v272
        %v274 = vpop.xlane.xlu0 %273
        %v275 = vadd.f32 %v249, 0.0
        %v276 = vadd.f32 %v252, 0.0
        %v277 = vadd.f32 %v255, 0.0
        %v278 = vadd.f32 %v258, 0.0
        %v279 = vadd.f32 %v265, 0.0
        %v280 = vadd.f32 %v268, 0.0
        %v281 = vadd.f32 %v271, 0.0
        %v282 = vadd.f32 %v274, 0.0
        %v283 = vmul.f32 %v275, 0.015625
        %v284 = vmul.f32 %v276, 0.015625
        %v285 = vmul.f32 %v277, 0.015625
        %v286 = vmul.f32 %v278, 0.015625
        %v287 = vmul.f32 %v279, 0.015625
        %v288 = vmul.f32 %v280, 0.015625
        %v289 = vmul.f32 %v281, 0.015625
        %v290 = vmul.f32 %v282, 0.015625
        %v291 = vmul.f32 %v283, %v283
        %v292 = vmul.f32 %v284, %v284
        %v293 = vmul.f32 %v285, %v285
        %v294 = vmul.f32 %v286, %v286
        %v295 = vsub.f32 %v287, %v291
        %v296 = vsub.f32 %v288, %v292
        %v297 = vsub.f32 %v289, %v293
        %v298 = vsub.f32 %v290, %v294
        %v299 = vmax.f32 %v295, 0.0
        %v300 = vmax.f32 %v296, 0.0
        %v301 = vmax.f32 %v297, 0.0
        %v302 = vmax.f32 %v298, 0.0
        %v303 = vadd.f32 %v299, 1e-05
        %v304 = vadd.f32 %v300, 1e-05
        %v305 = vadd.f32 %v301, 1e-05
        %v306 = vadd.f32 %v302, 1e-05
        %v307 = vrsqrt.pop %v303
        %v308 = vrsqrt.pop %v304
        %v309 = vrsqrt.pop %v305
        %v310 = vrsqrt.pop %v306
        %v311 = vsub.f32 %v242, %v283
        %v312 = vsub.f32 %v243, %v284
        %v313 = vsub.f32 %v244, %v285
        %v314 = vsub.f32 %v245, %v286
        %v315 = vmul.f32 %v311, %v307
        %v316 = vmul.f32 %v312, %v308
        %v317 = vmul.f32 %v313, %v309
        %v318 = vmul.f32 %v314, %v310
        %v319 = vpack.c.bf16 %v316, %v315
        %v320 = vpack.c.bf16 %v318, %v317
        %v321 = vld [vmem:[%s1] sm:$0xf]
        %v322 = vld [vmem:[%s1 + $0x4] sm:$0xf]
        %v323 = vld [vmem:[%s1 + $0x8] sm:$0xf]
        %v324 = vld [vmem:[%s1 + $0xc] sm:$0xf]
        %v325 = vld [vmem:[%s1 + $0x10] sm:$0xf]
        %v326 = vld [vmem:[%s1 + $0x14] sm:$0xf]
        %v327 = vld [vmem:[%s1 + $0x18] sm:$0xf]
        %v328 = vld [vmem:[%s1 + $0x1c] sm:$0xf]
        %v329 = vld [vmem:[%s1 + $0x20] sm:$0xf]
        %v330 = vld [vmem:[%s1 + $0x24] sm:$0xf]
        %v331 = vld [vmem:[%s1 + $0x28] sm:$0xf]
        %v332 = vld [vmem:[%s1 + $0x2c] sm:$0xf]
        %v333 = vld [vmem:[%s2] sm:$0xff]
        %v334 = vld [vmem:[%s2 + $0x8] sm:$0xff]
        %v335 = vld [vmem:[%s2 + $0x10] sm:$0xff]
        %v336 = vld [vmem:[%s2 + $0x18] sm:$0xff]
        %v337 = vld [vmem:[%s2 + $0x20] sm:$0xff]
        %v338 = vld [vmem:[%s2 + $0x28] sm:$0xff]
        %v339 = vld [vmem:[%s2 + $0x30] sm:$0xff]
        %v340 = vld [vmem:[%s2 + $0x38] sm:$0xff]
        %v341 = vld [vmem:[%s2 + $0x40] sm:$0xff]
        %v342 = vld [vmem:[%s2 + $0x48] sm:$0xff]
        %v343 = vld [vmem:[%s2 + $0x50] sm:$0xff]
        %v344 = vld [vmem:[%s2 + $0x58] sm:$0xff]
        %346 = vset.pattern.permute.xlu0 0
        %347 = vperm.xlu0 %346, %v333
        %v348 = vpop.permute.xlu0 %347
        %351 = vset.pattern.permute.xlu0 0
        %352 = vperm.xlu0 %351, %v334
        %v353 = vpop.permute.xlu0 %352
        %356 = vset.pattern.permute.xlu0 0
        %357 = vperm.xlu0 %356, %v335
        %v358 = vpop.permute.xlu0 %357
        %361 = vset.pattern.permute.xlu0 0
        %362 = vperm.xlu0 %361, %v336
        %v363 = vpop.permute.xlu0 %362
        %366 = vset.pattern.permute.xlu0 0
        %367 = vperm.xlu0 %366, %v337
        %v368 = vpop.permute.xlu0 %367
        %371 = vset.pattern.permute.xlu0 0
        %372 = vperm.xlu0 %371, %v338
        %v373 = vpop.permute.xlu0 %372
        %376 = vset.pattern.permute.xlu0 0
        %377 = vperm.xlu0 %376, %v339
        %v378 = vpop.permute.xlu0 %377
        %381 = vset.pattern.permute.xlu0 0
        %382 = vperm.xlu0 %381, %v340
        %v383 = vpop.permute.xlu0 %382
        %386 = vset.pattern.permute.xlu0 0
        %387 = vperm.xlu0 %386, %v341
        %v388 = vpop.permute.xlu0 %387
        %391 = vset.pattern.permute.xlu0 0
        %392 = vperm.xlu0 %391, %v342
        %v393 = vpop.permute.xlu0 %392
        %396 = vset.pattern.permute.xlu0 0
        %397 = vperm.xlu0 %396, %v343
        %v398 = vpop.permute.xlu0 %397
        %401 = vset.pattern.permute.xlu0 0
        %402 = vperm.xlu0 %401, %v344
        %v403 = vpop.permute.xlu0 %402
        %v417 = vunpack.c.l.b16 %v321
        %v418 = vunpack.c.l.b16 %v322
        %v419 = vunpack.c.l.b16 %v323
        %v420 = vunpack.c.l.b16 %v324
        %v421 = vunpack.c.l.b16 %v325
        %v422 = vunpack.c.l.b16 %v326
        %v423 = vunpack.c.l.b16 %v327
        %v424 = vunpack.c.l.b16 %v328
        %v425 = vunpack.c.l.b16 %v329
        %v426 = vunpack.c.l.b16 %v330
        %v427 = vunpack.c.l.b16 %v331
        %v428 = vunpack.c.l.b16 %v332
        %v429 = vpack.c.b16 %v418, %v417
        %v430 = vpack.c.b16 %v420, %v419
        %v431 = vpack.c.b16 %v422, %v421
        %v432 = vpack.c.b16 %v424, %v423
        %v433 = vpack.c.b16 %v426, %v425
        %v434 = vpack.c.b16 %v428, %v427
        %vm435 = vcmask 261120
        %v437 = vsel %vm435, %v429, 0
        %v440 = vsel %vm435, %v430, 0
        %v443 = vsel %vm435, %v431, 0
        %v446 = vsel %vm435, %v432, 0
        %v449 = vsel %vm435, %v433, 0
        %v452 = vsel %vm435, %v434, 0
        %454 = vmatprep.subr.bf16.mxu0 0
        %455 = vmatpush1.bf16.msra.mxu0 %v319
        %456 = vmatprep.subr.bf16.mxu0 0
        %457 = vmatpush1.bf16.msra.mxu0 %v320
        %458 = vmatprep.subr.bf16.mxu0 0
        %459 = vmatpush1.bf16.msra.mxu0 0
        %460 = vmatprep.subr.bf16.mxu0 0
        %461 = vmatpush1.bf16.msra.mxu0 0
        %462 = vmatprep.subr.bf16.mxu0 0
        %463 = vmatpush1.bf16.msra.mxu0 0
        %464 = vmatprep.subr.bf16.mxu0 0
        %465 = vmatpush1.bf16.msra.mxu0 0
        %466 = vmatprep.subr.bf16.mxu0 0
        %467 = vmatpush1.bf16.msra.mxu0 0
        %468 = vmatprep.subr.bf16.mxu0 0
        %469 = vmatpush1.bf16.msra.mxu0 0
        %470 = vmatprep.subr.bf16.mxu0 0
        %471 = vmatpush1.bf16.msra.mxu0 0
        %472 = vmatprep.subr.bf16.mxu0 0
        %473 = vmatpush1.bf16.msra.mxu0 0
        %474 = vmatprep.subr.bf16.mxu0 0
        %475 = vmatpush1.bf16.msra.mxu0 0
        %476 = vmatprep.subr.bf16.mxu0 0
        %477 = vmatpush1.bf16.msra.mxu0 0
        %478 = vmatprep.subr.bf16.mxu0 0
        %479 = vmatpush1.bf16.msra.mxu0 0
        %480 = vmatprep.subr.bf16.mxu0 0
        %481 = vmatpush1.bf16.msra.mxu0 0
        %482 = vmatprep.subr.bf16.mxu0 0
        %483 = vmatpush1.bf16.msra.mxu0 0
        %484 = vmatprep.subr.bf16.mxu0 0
        %485 = vmatpush1.bf16.msra.mxu0 0
        %486 = vmatprep.mubr.bf16.mxu0 0
        %487 = vmatmul.mubr.bf16.gmra.mrb[0].mxu0 %v437
        %v488 = vpop.f32.mrb[0].mxu0
        %v489 = vadd.f32 %v348, %v488
        %v490 = vpop.f32.mrb[0].mxu0
        %v491 = vpop.f32.mrb[0].mxu0
        %v492 = vadd.f32 %v353, %v491
        %v493 = vpop.f32.mrb[0].mxu0
        %494 = vmatprep.mubr.bf16.mxu0 0
        %495 = vmatmul.mubr.bf16.gmra.mrb[0].mxu0 %v440
        %v496 = vpop.f32.mrb[0].mxu0
        %v497 = vadd.f32 %v358, %v496
        %v498 = vpop.f32.mrb[0].mxu0
        %v499 = vpop.f32.mrb[0].mxu0
        %v500 = vadd.f32 %v363, %v499
        %v501 = vpop.f32.mrb[0].mxu0
        %502 = vmatprep.mubr.bf16.mxu0 0
        %503 = vmatmul.mubr.bf16.gmra.mrb[0].mxu0 %v443
        %v504 = vpop.f32.mrb[0].mxu0
        %v505 = vadd.f32 %v368, %v504
        %v506 = vpop.f32.mrb[0].mxu0
        %v507 = vpop.f32.mrb[0].mxu0
        %v508 = vadd.f32 %v373, %v507
        %v509 = vpop.f32.mrb[0].mxu0
        %510 = vmatprep.mubr.bf16.mxu0 0
        %511 = vmatmul.mubr.bf16.gmra.mrb[0].mxu0 %v446
        %v512 = vpop.f32.mrb[0].mxu0
        %v513 = vadd.f32 %v378, %v512
        %v514 = vpop.f32.mrb[0].mxu0
        %v515 = vpop.f32.mrb[0].mxu0
        %v516 = vadd.f32 %v383, %v515
        %v517 = vpop.f32.mrb[0].mxu0
        %518 = vmatprep.mubr.bf16.mxu0 0
        %519 = vmatmul.mubr.bf16.gmra.mrb[0].mxu0 %v449
        %v520 = vpop.f32.mrb[0].mxu0
        %v521 = vadd.f32 %v388, %v520
        %v522 = vpop.f32.mrb[0].mxu0
        %v523 = vpop.f32.mrb[0].mxu0
        %v524 = vadd.f32 %v393, %v523
        %v525 = vpop.f32.mrb[0].mxu0
        %526 = vmatprep.mubr.bf16.mxu0 0
        %527 = vmatmul.mubr.bf16.gmra.mrb[0].mxu0 %v452
        %v528 = vpop.f32.mrb[0].mxu0
        %v529 = vadd.f32 %v398, %v528
        %v530 = vpop.f32.mrb[0].mxu0
        %v531 = vpop.f32.mrb[0].mxu0
        %v532 = vadd.f32 %v403, %v531
        %v533 = vpop.f32.mrb[0].mxu0
        %534 = vdwg.mxu0
        %535 = vst.msk [vmem:[%s221] sm:$0xff] %vm246, %v489
        %536 = vst.msk [vmem:[%s221 + $0x8] sm:$0xff] %vm246, %v492
        %537 = vst.msk [vmem:[%s221 + $0x10] sm:$0xff] %vm246, %v497
        %538 = vst.msk [vmem:[%s221 + $0x18] sm:$0xff] %vm246, %v500
        %539 = vst.msk [vmem:[%s228] sm:$0xff] %vm246, %v505
        %540 = vst.msk [vmem:[%s228 + $0x8] sm:$0xff] %vm246, %v508
        %541 = vst.msk [vmem:[%s228 + $0x10] sm:$0xff] %vm246, %v513
        %542 = vst.msk [vmem:[%s228 + $0x18] sm:$0xff] %vm246, %v516
        %543 = vst.msk [vmem:[%s235] sm:$0xff] %vm246, %v521
        %544 = vst.msk [vmem:[%s235 + $0x8] sm:$0xff] %vm246, %v524
        %545 = vst.msk [vmem:[%s235 + $0x10] sm:$0xff] %vm246, %v529
        %546 = vst.msk [vmem:[%s235 + $0x18] sm:$0xff] %vm246, %v532
        %s547 = sand.u32 %s99, 1
        %s548 = scalar_lea.sflag [#allocation3], %s547
        %s549 = sand.u32 %s99, 1
        %s550 = smul.addr %s549, 32
        %s551 = scalar_lea.vmem [#allocation2], %s550
        %s552 = sand.u32 %s23, 1
        %s553 = scalar_lea.sflag [#allocation5], %s552
        %s554 = sand.u32 %s125, 1
        %s555 = smul.addr %s554, 32
        %s556 = scalar_lea.vmem [#allocation4], %s555
        %s557 = sand.u32 %s23, 1
        %s558 = scalar_lea.sflag [#allocation5], %s557
        %s559 = sand.u32 %s151, 1
        %s560 = smul.addr %s559, 32
        %s561 = scalar_lea.vmem [#allocation6], %s560
        // Predicated region
        $region33: #{tpu_custom_call.1} parent=31 // pred_check
          %p562 = pneg %p109
        $region34: #{tpu_custom_call.1} parent=31 // pred_check_branch
          %564 = sbr.rel (%p562) target = $region36
        $region35: #{tpu_custom_call.1} parent=31 // pred_region
          %s566 = ssub.s32 512, 512
          %567 = vsyncadd %s548, %s566
          %s568 = smul.addr %s23, 4
          %s569 = smul.addr %s568, 128
          %s570 = scalar_lea.hbm %s3, %s569
          %s571 = sshll.u32 %s551, 4
          %s572 = int_to_ptr.vmem [resolvable:$true] %s571
          %577 = dma.vmem_to_hbm [thread:$0]  %s572, 512, %s570, %s548, 128, 128, 8
        $region36: #{tpu_custom_call.1} parent=31 // pred_fallthru
          _
        // Predicated region
        $region37: #{tpu_custom_call.1} parent=31 // pred_check
          %p578 = pneg %p135
        $region38: #{tpu_custom_call.1} parent=31 // pred_check_branch
          %580 = sbr.rel (%p578) target = $region40
        $region39: #{tpu_custom_call.1} parent=31 // pred_region
          %s582 = ssub.s32 512, 512
          %583 = vsyncadd %s553, %s582
          %s584 = smul.addr %s23, 4
          %s585 = smul.addr %s584, 128
          %s586 = scalar_lea.hbm %s4, %s585
          %s587 = sshll.u32 %s556, 4
          %s588 = int_to_ptr.vmem [resolvable:$true] %s587
          %593 = dma.vmem_to_hbm [thread:$0]  %s588, 512, %s586, %s553, 128, 128, 8
        $region40: #{tpu_custom_call.1} parent=31 // pred_fallthru
          _
        // Predicated region
        $region41: #{tpu_custom_call.1} parent=31 // pred_check
          %p594 = pneg %p161
        $region42: #{tpu_custom_call.1} parent=31 // pred_check_branch
          %596 = sbr.rel (%p594) target = $region44
        $region43: #{tpu_custom_call.1} parent=31 // pred_region
          %s598 = ssub.s32 512, 512
          %599 = vsyncadd %s558, %s598
          %s600 = smul.addr %s23, 4
          %s601 = smul.addr %s600, 128
          %s602 = scalar_lea.hbm %s5, %s601
          %s603 = sshll.u32 %s561, 4
          %s604 = int_to_ptr.vmem [resolvable:$true] %s603
          %609 = dma.vmem_to_hbm [thread:$0]  %s604, 512, %s602, %s558, 128, 128, 8
        $region44: #{tpu_custom_call.1} parent=31 // pred_fallthru
          _
      $region32: #{tpu_custom_call.1} parent=5 // pred_fallthru
        _
      %p610 = scmp.le.s32.totalorder 2, %s18
      // Predicated region
      $region45: #{tpu_custom_call.1} parent=5 // pred_check
        %p611 = pneg %p610
      $region46: #{tpu_custom_call.1} parent=5 // pred_check_branch
        %613 = sbr.rel (%p611) target = $region48
      $region47: #{tpu_custom_call.1} parent=5 // pred_region
        %s614 = ssub.s32 %s18, 2
        // Predicated region
        $region49: #{tpu_custom_call.1} parent=47 // pred_check
          %p615 = pneg %p115
        $region50: #{tpu_custom_call.1} parent=47 // pred_check_branch
          %617 = sbr.rel (%p615) target = $region52
        $region51: #{tpu_custom_call.1} parent=47 // pred_region
          %s618 = sand.u32 %s100, 1
          %s619 = scalar_lea.sflag [#allocation3], %s618
          %s620 = sand.u32 %s100, 1
          %s621 = smul.addr %s620, 32
          %s622 = scalar_lea.vmem [#allocation2], %s621
          %623 = dma.done %s619, 512
        $region52: #{tpu_custom_call.1} parent=47 // pred_fallthru
          _
        // Predicated region
        $region53: #{tpu_custom_call.1} parent=47 // pred_check
          %p624 = pneg %p141
        $region54: #{tpu_custom_call.1} parent=47 // pred_check_branch
          %626 = sbr.rel (%p624) target = $region56
        $region55: #{tpu_custom_call.1} parent=47 // pred_region
          %s627 = sand.u32 %s24, 1
          %s628 = scalar_lea.sflag [#allocation5], %s627
          %s629 = sand.u32 %s126, 1
          %s630 = smul.addr %s629, 32
          %s631 = scalar_lea.vmem [#allocation4], %s630
          %632 = dma.done %s628, 512
        $region56: #{tpu_custom_call.1} parent=47 // pred_fallthru
          _
        // Predicated region
        $region57: #{tpu_custom_call.1} parent=47 // pred_check
          %p633 = pneg %p167
        $region58: #{tpu_custom_call.1} parent=47 // pred_check_branch
          %635 = sbr.rel (%p633) target = $region60
        $region59: #{tpu_custom_call.1} parent=47 // pred_region
          %s636 = sand.u32 %s24, 1
          %s637 = scalar_lea.sflag [#allocation5], %s636
          %s638 = sand.u32 %s152, 1
          %s639 = smul.addr %s638, 32
          %s640 = scalar_lea.vmem [#allocation6], %s639
          %641 = dma.done %s637, 512
        $region60: #{tpu_custom_call.1} parent=47 // pred_fallthru
          _
      $region48: #{tpu_custom_call.1} parent=5 // pred_fallthru
        _
    $region6: #{tpu_custom_call.1} parent=1 // loop_footer
      %s22 = sadd.s32 1, %s18
    $region7: #{tpu_custom_call.1} parent=1 // loop_footer_branch
      %17 = sbr.rel target = $region3
    $region8: #{tpu_custom_call.1} parent=1 // loop_exit
      _
    %642 = vsyncpa [#allocation3], 1
    %s643 = scalar_lea.sflag [#allocation3], 1
    %644 = vsyncpa %s643, 1
    %645 = vsyncpa [#allocation5], 1
    %s646 = scalar_lea.sflag [#allocation5], 1
    %647 = vsyncpa %s646, 1

</llo_original>
